<compile_context>
chip_gen: v5e
topology: v5e:2x2
jax: 0.10.0
libtpu: 0.0.40
codegen_flags: <defaults>
</compile_context>

<pallas_src>
import functools

import jax
import jax.numpy as jnp
from jax.experimental import pallas as pl
from jax.experimental.pallas import tpu as pltpu


def _layernorm_kernel(param_ref, x_ref, o_ref, *, eps):
    # param_ref lives in SMEM: param_ref[0] = alpha, param_ref[1] = beta
    alpha = param_ref[0]
    beta = param_ref[1]

    x = x_ref[...].astype(jnp.float32)          # (rows_tile, hidden)
    n = x.shape[-1]

    mean = jnp.mean(x, axis=-1, keepdims=True)
    diff = x - mean
    # torch.std() is unbiased by default (divides by N-1), and the module adds
    # eps to std (not to var) -- keep those exact semantics.
    var = jnp.sum(diff * diff, axis=-1, keepdims=True) * (1.0 / (n - 1))
    std = jnp.sqrt(var)

    # Reciprocal-multiply: the divide moves to the EUP slot; the (rows_tile, 1)
    # scale is formed once, so the full-tile work is a single mul + add.
    # Exact reciprocal (approx=False) to hold 1e-5 atol vs. the f32 reference.
    inv = pl.reciprocal(std + eps)
    scale = alpha * inv                         # (rows_tile, 1)
    o_ref[...] = (diff * scale + beta).astype(o_ref.dtype)


def _round_up(x, m):
    return ((x + m - 1) // m) * m


def _pick_rows_tile(rows, hidden, itemsize):
    """Largest row tile whose double-buffered in+out tiles fit a v7x-safe VMEM budget."""
    sublane = 8 * (4 // itemsize)          # 8 for f32, 16 for bf16, 32 for int8
    budget = 48 * 1024 * 1024              # 4 buffers must fit v7x's 64 MiB VMEM
    cap = max(sublane, budget // (4 * hidden * itemsize))
    rt = min(512, cap)                     # ~512-row tiles reach HBM roofline on v6e
    # Keep the grid length >= 2 so the parallel axis can feed both v7x TensorCores.
    rt = min(rt, max(sublane, _round_up(pl.cdiv(rows, 2), sublane)))
    rt = max(sublane, (rt // sublane) * sublane)
    return rt


def layer_norm(x, alpha, beta, eps=1e-6, rows_tile=None):
    """Pallas implementation of the custom PyTorch LayerNorm module.

    x:      any shape (..., hidden); normalization over the last axis.
    alpha:  scalar parameter, shape (1,)
    beta:   scalar parameter, shape (1,)
    """
    orig_shape = x.shape
    hidden = orig_shape[-1]
    rows = 1
    for d in orig_shape[:-1]:
        rows *= d
    x2 = x.reshape(rows, hidden)

    itemsize = jnp.dtype(x.dtype).itemsize
    if rows_tile is None:
        rows_tile = _pick_rows_tile(rows, hidden, itemsize)

    # Pad rows up to a multiple of rows_tile (padded zero-rows produce finite
    # values that are sliced away) instead of forcing a tiny divisor tile.
    rows_padded = _round_up(rows, rows_tile)
    if rows_padded != rows:
        x2 = jnp.pad(x2, ((0, rows_padded - rows), (0, 0)))

    # Pack scalar parameters into one SMEM array: [alpha, beta].
    params = jnp.concatenate(
        [alpha.astype(jnp.float32).reshape(1), beta.astype(jnp.float32).reshape(1)]
    )

    grid = (rows_padded // rows_tile,)

    # Explicit scoped-VMEM budget: 2x(in tile) + 2x(out tile) + headroom,
    # clamped to 64 MiB so the same setting is safe on v5e/v6e/v7x.
    tile_bytes = rows_tile * hidden * itemsize
    vmem_limit = min(64 * 1024 * 1024,
                     max(32 * 1024 * 1024, 4 * tile_bytes + (2 << 20)))

    cost = pl.CostEstimate(
        flops=8 * rows * hidden,
        transcendentals=2 * rows,            # sqrt + reciprocal per row
        bytes_accessed=2 * rows * hidden * itemsize,
    )

    # TODO(synk): for hidden < 128 (like the 32-wide demo) the last dim is not
    # lane-dense; this is accepted here since the block spans the full hidden
    # axis. Real workloads should use hidden % 128 == 0 for unmasked stores.
    out2 = pl.pallas_call(
        functools.partial(_layernorm_kernel, eps=eps),
        out_shape=jax.ShapeDtypeStruct((rows_padded, hidden), x.dtype),
        grid=grid,
        in_specs=[
            pl.BlockSpec(memory_space=pltpu.SMEM),                 # [alpha, beta]
            pl.BlockSpec((rows_tile, hidden), lambda i: (i, 0)),
        ],
        out_specs=pl.BlockSpec((rows_tile, hidden), lambda i: (i, 0)),
        compiler_params=pltpu.CompilerParams(
            dimension_semantics=("parallel",),
            vmem_limit_bytes=vmem_limit,
        ),
        cost_estimate=cost,
    )(params, x2)

    return out2[:rows].reshape(orig_shape)


def layer_norm_ref(x, alpha, beta, eps=1e-6):
    """Pure-JAX reference matching the PyTorch forward exactly."""
    x32 = x.astype(jnp.float32)
    mean = jnp.mean(x32, axis=-1, keepdims=True)
    n = x32.shape[-1]
    var = jnp.sum((x32 - mean) ** 2, axis=-1, keepdims=True) / (n - 1)
    std = jnp.sqrt(var)
    return (alpha * (x32 - mean) / (std + eps) + beta).astype(x.dtype)


if __name__ == "__main__":
    key = jax.random.PRNGKey(0)

    # deterministic parameter init matching nn.Parameter(torch.ones(1)) / zeros(1)
    alpha = jnp.ones((1,), dtype=jnp.float32)
    beta = jnp.zeros((1,), dtype=jnp.float32)

    # small shapes implied by the forward: (batch=2, seq=8, hidden=32)
    x = jax.random.normal(key, (2, 8, 32), dtype=jnp.float32)
    out = jax.block_until_ready(layer_norm(x, alpha, beta, eps=1e-6))
    ref = layer_norm_ref(x, alpha, beta, eps=1e-6)
    assert out.shape == x.shape
    assert jnp.allclose(out, ref, atol=1e-5, rtol=1e-5), "mismatch vs reference"

    # second check exercising the padded-rows path (rows=15, not a tile multiple)
    x2 = jax.random.normal(jax.random.PRNGKey(1), (3, 5, 32), dtype=jnp.float32)
    out2 = jax.block_until_ready(layer_norm(x2, alpha, beta, eps=1e-6))
    ref2 = layer_norm_ref(x2, alpha, beta, eps=1e-6)
    assert out2.shape == x2.shape
    assert jnp.allclose(out2, ref2, atol=1e-5, rtol=1e-5), "mismatch vs reference (padded)"

    print("KERNEL_OK")
</pallas_src>

<mosaic_0001>
module attributes {stable_mosaic.version = 11 : i64} {
  func.func @_layernorm_kernel(%arg0: i32, %arg1: memref<2xf32, #tpu.memory_space<smem>>, %arg2: memref<8x32xf32, #tpu.memory_space<vmem>>, %arg3: memref<8x32xf32, #tpu.memory_space<vmem>>) attributes {dimension_semantics = [#tpu.dimension_semantics<parallel>], iteration_bounds = array<i64: 2>, scalar_prefetch = 0 : i64, scratch_operands = 0 : i64, tpu.core_type = #tpu.core_type<tc>, window_params = [{transform_indices = @transform_0, window_bounds = array<i64: 2>}, {transform_indices = @transform_1, window_bounds = array<i64: 8, 32>}, {transform_indices = @transform_2, window_bounds = array<i64: 8, 32>}]} {
    %c0 = arith.constant 0 : index
    %0 = memref.load %arg1[%c0] : memref<2xf32, #tpu.memory_space<smem>>
    %c1 = arith.constant 1 : index
    %1 = memref.load %arg1[%c1] : memref<2xf32, #tpu.memory_space<smem>>
    %c0_0 = arith.constant 0 : index
    %c0_1 = arith.constant 0 : index
    %2 = vector.load %arg2[%c0_0, %c0_1] : memref<8x32xf32, #tpu.memory_space<vmem>>, vector<8x32xf32>
    %cst = arith.constant dense<0.000000e+00> : vector<8xf32>
    %3 = vector.multi_reduction <add>, %2, %cst [1] : vector<8x32xf32> to vector<8xf32>
    %4 = vector.shape_cast %3 : vector<8xf32> to vector<8x1xf32>
    %cst_2 = arith.constant 3.200000e+01 : f32
    %5 = vector.broadcast %cst_2 : f32 to vector<8x1xf32>
    %6 = arith.divf %4, %5 : vector<8x1xf32>
    %7 = vector.broadcast %6 : vector<8x1xf32> to vector<8x32xf32>
    %8 = arith.subf %2, %7 : vector<8x32xf32>
    %9 = arith.mulf %8, %8 : vector<8x32xf32>
    %cst_3 = arith.constant dense<0.000000e+00> : vector<8xf32>
    %10 = vector.multi_reduction <add>, %9, %cst_3 [1] : vector<8x32xf32> to vector<8xf32>
    %11 = vector.shape_cast %10 : vector<8xf32> to vector<8x1xf32>
    %cst_4 = arith.constant 0.0322580636 : f32
    %12 = vector.broadcast %cst_4 : f32 to vector<8x1xf32>
    %13 = arith.mulf %11, %12 : vector<8x1xf32>
    %14 = math.sqrt %13 : vector<8x1xf32>
    %cst_5 = arith.constant 9.99999997E-7 : f32
    %15 = vector.broadcast %cst_5 : f32 to vector<8x1xf32>
    %16 = arith.addf %14, %15 : vector<8x1xf32>
    %17 = tpu.reciprocal %16 : vector<8x1xf32> -> vector<8x1xf32>
    %18 = vector.broadcast %0 : f32 to vector<8x1xf32>
    %19 = arith.mulf %18, %17 : vector<8x1xf32>
    %20 = vector.broadcast %19 : vector<8x1xf32> to vector<8x32xf32>
    %21 = arith.mulf %8, %20 : vector<8x32xf32>
    %22 = vector.broadcast %1 : f32 to vector<8x32xf32>
    %23 = arith.addf %21, %22 : vector<8x32xf32>
    %c0_6 = arith.constant 0 : index
    %c0_7 = arith.constant 0 : index
    %24 = vector.load %arg3[%c0_6, %c0_7] : memref<8x32xf32, #tpu.memory_space<vmem>>, vector<8x32xf32>
    tpu.vector_store %arg3[%c0_6, %c0_7], %23 {strides = array<i32>} : memref<8x32xf32, #tpu.memory_space<vmem>>, vector<8x32xf32>,
    return
  }
  func.func @transform_0(%arg0: i32) -> i32 {
    %c0_i32 = arith.constant 0 : i32
    %c0_i32_0 = arith.constant 0 : i32
    return %c0_i32 : i32
  }
  func.func @transform_1(%arg0: i32) -> (i32, i32) {
    %c0_i32 = arith.constant 0 : i32
    %c0_i32_0 = arith.constant 0 : i32
    return %arg0, %c0_i32 : i32, i32
  }
  func.func @transform_2(%arg0: i32) -> (i32, i32) {
    %c0_i32 = arith.constant 0 : i32
    %c0_i32_0 = arith.constant 0 : i32
    return %arg0, %c0_i32 : i32, i32
  }
}

</mosaic_0001>

<llo_original>
// kernel: tpu_custom_call.1
$region0: #{tpu_custom_call.1}
  #allocation0 [shape = 'u32[]', space=smem, size = 0x4, offset = 0x4, fixed_abs, tag = 'smem constant byte address 0x4 - core index']
  #allocation1 [shape = 'u32[72,128]{1,0:T(1,128)}', space=vmem, size = 0x9000, scoped, tag = 'internal scratch']
  %s0 = inlined_call_operand.hbm [shape: f32[2], index: 0, kind: input, shape index: {}]
  %s1 = inlined_call_operand.hbm [shape: f32[16,32], index: 1, kind: input, shape index: {}]
  %s2 = inlined_call_operand.hbm [shape: f32[16,32], index: 2, kind: output, shape index: {}]
  %s3 = sld [smem:[#allocation0]]
  $region49: #{tpu_custom_call.1} parent=0
    _
  %s5 = ssub.s32 1, %s3
  %s6 = scalar_select 0, %s5, %s3
  $region1: #{tpu_custom_call.1} parent=0
    #allocation2 [shape = 'u8[512]{0}', space=smem, size = 0x200, scoped, tag = 'input window, operand 0, single buffered']
    #allocation3 [shape = 's32[2]{0}', space=sflag, size = 0x8, scoped, tag = 'scoped memory for tpu_custom_call.1']
    #allocation4 [shape = 's32[2]{0}', space=sflag, size = 0x8, scoped, tag = 'scoped memory for tpu_custom_call.1']
    #allocation5 [shape = 's32[2]{0}', space=sflag, size = 0x8, scoped, tag = 'scoped memory for tpu_custom_call.1']
    #allocation6 [shape = 'u8[8192]{0}', space=vmem, size = 0x2000, scoped, tag = 'input window, operand 1']
    #allocation7 [shape = 'u8[8192]{0}', space=vmem, size = 0x2000, scoped, tag = 'output window, operand 0']
    %7 = vsyncpa [#allocation5], 0
    %8 = vsyncpa [#allocation3], 0
    %s9 = scalar_lea.sflag [#allocation3], 1
    %10 = vsyncpa %s9, 0
    %11 = vsyncpa [#allocation4], 0
    %s12 = scalar_lea.sflag [#allocation4], 1
    %13 = vsyncpa %s12, 0
    loop: start=0, step=1, limit=4
    $region2: #{tpu_custom_call.1} parent=1 // loop_pre_header
      _
    $region3: #{tpu_custom_call.1} parent=1 // loop_header
      %s15 = sphi 0, %s19
      %p16 = scmp.ge.s32.totalorder %s15, 4
      %s23 = sphi 0, %s23
      %s25 = sphi 0, %s23
      %s26 = sphi 0, %s25
      %s40 = sphi 0, %s26
      %s46 = sphi 0, %s48
      %s49 = sphi 0, %s46
      %s50 = sphi 0, %s49
      %s66 = sphi 0, %s50
      %s72 = sphi 0, %s74
      %s75 = sphi 0, %s72
      %s76 = sphi 0, %s75
      %s92 = sphi 0, %s76
    $region4: #{tpu_custom_call.1} parent=1 // loop_header_branch
      %18 = sbr.rel (%p16) target = $region8
    $region5: #{tpu_custom_call.1} parent=1 // loop_body
      %s20 = ssub.s32 %s15, 1
      %s21 = ssub.s32 %s15, 2
      %s22 = sadd.s32 %s15, 1
      %s24 = sadd.s32 %s23, 1
      %p27 = scmp.eq.s32.totalorder %s15, 1
      %p28 = scmp.ne.s32.totalorder %s23, %s25
      %p29 = scmp.eq.s32.totalorder %s15, 0
      %p30 = por %p28, %p29
      %p31 = scmp.ne.s32.totalorder %s23, %s25
      %p32 = scmp.eq.s32.totalorder %s20, 1
      %p33 = por %p31, %p32
      %p34 = scmp.ne.s32.totalorder %s25, %s26
      %p35 = scmp.eq.s32.totalorder %s20, 0
      %p36 = por %p34, %p35
      %p37 = scmp.ne.s32.totalorder %s25, %s26
      %p38 = scmp.eq.s32.totalorder %s21, 1
      %p39 = por %p37, %p38
      %p41 = scmp.ne.s32.totalorder %s26, %s40
      %p42 = scmp.eq.s32.totalorder %s21, 0
      %p43 = por %p41, %p42
      %s44 = ssub.s32 %s15, %s22
      %p45 = scmp.eq.s32.totalorder %s44, 0
      %s47 = sadd.s32 %s46, 1
      %s48 = scalar_select %p45, %s46, %s47
      %p51 = pneg %p45
      %p52 = scmp.eq.s32.totalorder %s15, 1
      %p53 = por %p51, %p52
      %p54 = scmp.ne.s32.totalorder %s46, %s49
      %p55 = scmp.eq.s32.totalorder %s15, 0
      %p56 = por %p54, %p55
      %p57 = scmp.ne.s32.totalorder %s46, %s49
      %p58 = scmp.eq.s32.totalorder %s20, 1
      %p59 = por %p57, %p58
      %p60 = scmp.ne.s32.totalorder %s49, %s50
      %p61 = scmp.eq.s32.totalorder %s20, 0
      %p62 = por %p60, %p61
      %p63 = scmp.ne.s32.totalorder %s49, %s50
      %p64 = scmp.eq.s32.totalorder %s21, 1
      %p65 = por %p63, %p64
      %p67 = scmp.ne.s32.totalorder %s50, %s66
      %p68 = scmp.eq.s32.totalorder %s21, 0
      %p69 = por %p67, %p68
      %s70 = ssub.s32 %s15, %s22
      %p71 = scmp.eq.s32.totalorder %s70, 0
      %s73 = sadd.s32 %s72, 1
      %s74 = scalar_select %p71, %s72, %s73
      %p77 = pneg %p71
      %p78 = scmp.eq.s32.totalorder %s15, 1
      %p79 = por %p77, %p78
      %p80 = scmp.ne.s32.totalorder %s72, %s75
      %p81 = scmp.eq.s32.totalorder %s15, 0
      %p82 = por %p80, %p81
      %p83 = scmp.ne.s32.totalorder %s72, %s75
      %p84 = scmp.eq.s32.totalorder %s20, 1
      %p85 = por %p83, %p84
      %p86 = scmp.ne.s32.totalorder %s75, %s76
      %p87 = scmp.eq.s32.totalorder %s20, 0
      %p88 = por %p86, %p87
      %p89 = scmp.ne.s32.totalorder %s75, %s76
      %p90 = scmp.eq.s32.totalorder %s21, 1
      %p91 = por %p89, %p90
      %p93 = scmp.ne.s32.totalorder %s76, %s92
      %p94 = scmp.eq.s32.totalorder %s21, 0
      %p95 = por %p93, %p94
      %p96 = scmp.le.s32.totalorder 1, %s15
      %p97 = scmp.lt.s32.totalorder %s15, 3
      %p98 = pnand %p96, %p97
      %p99 = pneg %p98
      // Predicated region
      $region9: #{tpu_custom_call.1} parent=5 // pred_check
        _
      $region10: #{tpu_custom_call.1} parent=5 // pred_check_branch
        %101 = sbr.rel (%p98) target = $region12
      $region11: #{tpu_custom_call.1} parent=5 // pred_region
        %s102 = ssub.s32 %s15, 1
        // Predicated region
        $region13: #{tpu_custom_call.1} parent=11 // pred_check
          %p103 = pneg %p36
        $region14: #{tpu_custom_call.1} parent=11 // pred_check_branch
          %105 = sbr.rel (%p103) target = $region16
        $region15: #{tpu_custom_call.1} parent=11 // pred_region
          %107 = vsyncadd [#allocation5], 0
          %s109 = sshll.u32 %s0, 4
          %s110 = int_to_ptr.hbm [resolvable:$true] %s109
          %112 = dma.hbm_to_smem %s110, 16, [#allocation2], [#allocation5]
        $region16: #{tpu_custom_call.1} parent=11 // pred_fallthru
          _
      $region12: #{tpu_custom_call.1} parent=5 // pred_fallthru
        _
      %p113 = scmp.lt.s32.totalorder %s15, 2
      // Predicated region
      $region17: #{tpu_custom_call.1} parent=5 // pred_check
        %p114 = pneg %p113
      $region18: #{tpu_custom_call.1} parent=5 // pred_check_branch
        %116 = sbr.rel (%p114) target = $region20
      $region19: #{tpu_custom_call.1} parent=5 // pred_region
        // Predicated region
        $region21: #{tpu_custom_call.1} parent=19 // pred_check
          %p117 = pneg %p56
        $region22: #{tpu_custom_call.1} parent=19 // pred_check_branch
          %119 = sbr.rel (%p117) target = $region24
        $region23: #{tpu_custom_call.1} parent=19 // pred_region
          %s120 = sand.u32 %s46, 1
          %s121 = scalar_lea.sflag [#allocation3], %s120
          %s122 = sand.u32 %s46, 1
          %s123 = smul.addr %s122, 8
          %s124 = scalar_lea.vmem [#allocation6], %s123
          %126 = vsyncadd %s121, 0
          %s127 = smul.addr %s15, 8
          %s128 = scalar_lea.hbm %s1, %s127
          %s130 = sshll.u32 %s128, 4
          %s131 = int_to_ptr.hbm [resolvable:$true] %s130
          %s132 = sshll.u32 %s124, 4
          %s133 = int_to_ptr.vmem [resolvable:$true] %s132
          %135 = dma.hbm_to_vmem [thread:$0]  %s131, 128, %s133, %s121
        $region24: #{tpu_custom_call.1} parent=19 // pred_fallthru
          _
      $region20: #{tpu_custom_call.1} parent=5 // pred_fallthru
        _
      %p136 = scmp.le.s32.totalorder 1, %s15
      %p137 = scmp.lt.s32.totalorder %s15, 3
      %p138 = pnand %p136, %p137
      %p139 = pneg %p138
      // Predicated region
      $region25: #{tpu_custom_call.1} parent=5 // pred_check
        _
      $region26: #{tpu_custom_call.1} parent=5 // pred_check_branch
        %141 = sbr.rel (%p138) target = $region28
      $region27: #{tpu_custom_call.1} parent=5 // pred_region
        %s142 = ssub.s32 %s15, 1
        // Predicated region
        $region29: #{tpu_custom_call.1} parent=27 // pred_check
          %p143 = pneg %p36
        $region30: #{tpu_custom_call.1} parent=27 // pred_check_branch
          %145 = sbr.rel (%p143) target = $region32
        $region31: #{tpu_custom_call.1} parent=27 // pred_region
          %147 = dma.done [#allocation5], 16
        $region32: #{tpu_custom_call.1} parent=27 // pred_fallthru
          _
        %s148 = sand.u32 %s49, 1
        %s149 = scalar_lea.sflag [#allocation3], %s148
        %s150 = sand.u32 %s49, 1
        %s151 = smul.addr %s150, 8
        %s152 = scalar_lea.vmem [#allocation6], %s151
        // Predicated region
        $region33: #{tpu_custom_call.1} parent=27 // pred_check
          %p153 = pneg %p62
        $region34: #{tpu_custom_call.1} parent=27 // pred_check_branch
          %155 = sbr.rel (%p153) target = $region36
        $region35: #{tpu_custom_call.1} parent=27 // pred_region
          %157 = dma.done %s149, 128
        $region36: #{tpu_custom_call.1} parent=27 // pred_fallthru
          _
        %158 = sfence
        %p159 = pneg %p36
        %p160 = pneg %p33
        %s161 = sand.u32 %s49, 1
        %s162 = scalar_lea.sflag [#allocation3], %s161
        %s163 = sand.u32 %s49, 1
        %s164 = smul.addr %s163, 8
        %s165 = scalar_lea.vmem [#allocation6], %s164
        %p166 = pneg %p62
        %p167 = pneg %p59
        %p168 = pneg %p88
        %p169 = pneg %p85
        %s170 = sand.u32 %s75, 1
        %s171 = scalar_lea.sflag [#allocation4], %s170
        %s172 = sand.u32 %s75, 1
        %s173 = smul.addr %s172, 8
        %s174 = scalar_lea.vmem [#allocation7], %s173
        %s175 = sld [smem:[#allocation2]]
        %s176 = sld [smem:[#allocation2 + $0x1]]
        %v177 = vld [vmem:[%s152] sm:$0xff]
        %vm178 = vcmask 261120
        %v179 = vsel %vm178, %v177, 0.0
        %180 = vadd.xlane.f32.xlu0 %v179
        %v181 = vpop.xlane.xlu0 %180
        %v182 = vrcp.pop 32.0
        %v183 = vmul.f32 32.0, %v182
        %v184 = vsub.f32 1.0, %v183
        %v185 = vmul.f32 %v182, %v184
        %v186 = vadd.f32 %v182, %v185
        %vm187 = vweird.f32 %v182
        %v188 = vsel %vm187, %v182, %v186
        %v189 = vmul.f32 %v181, %v188
        %v190 = vsub.f32 %v177, %v189
        %v191 = vmul.f32 %v190, %v190
        %v192 = vsel %vm178, %v191, 0.0
        %193 = vadd.xlane.f32.xlu0 %v192
        %v194 = vpop.xlane.xlu0 %193
        %v195 = vmul.f32 %v194, 0.032258064
        %v196 = vrsqrt.pop %v195
        %v197 = vmul.f32 %v196, %v195
        %v198 = vmul.f32 %v197, %v196
        %v199 = vmul.f32 0.5, %v198
        %v200 = vsub.f32 1.5, %v199
        %v201 = vmul.f32 %v196, %v200
        %v202 = vmul.f32 %v195, %v201
        %vm203 = vcmp.eq.f32.partialorder %v195, inf
        %v204 = vsel %vm203, %v195, %v202
        %vm205 = vcmp.eq.f32.partialorder %v195, 0.0
        %v206 = vand.u32 %v195, 2147483648
        %v207 = vsel %vm205, %v206, %v204
        %v208 = vadd.f32 %v207, 1e-06
        %v209 = vrcp.pop %v208
        %v210 = vmul.f32 %v208, %v209
        %v211 = vsub.f32 1.0, %v210
        %v212 = vmul.f32 %v209, %v211
        %v213 = vadd.f32 %v209, %v212
        %vm214 = vweird.f32 %v208
        %vm215 = vweird.f32 %v209
        %vm216 = vmor %vm214, %vm215
        %v217 = vsel %vm216, %v209, %v213
        %v218 = vand.u32 2147483647, %v208
        %vm219 = vcmp.eq.f32.partialorder %v218, 8.507059e+37
        %v220 = vand.u32 %v208, 2147483648
        %v221 = vor.u32 1.1754944e-38, %v220
        %v222 = vsel %vm219, %v221, %v217
        %v223 = vstv %s175
        %v224 = vmul.f32 %v223, %v222
        %v225 = vmul.f32 %v190, %v224
        %v226 = vstv %s176
        %v227 = vadd.f32 %v225, %v226
        %228 = vst.msk [vmem:[%s174] sm:$0xff] %vm178, %v227
        %s229 = sand.u32 %s75, 1
        %s230 = scalar_lea.sflag [#allocation4], %s229
        %s231 = sand.u32 %s75, 1
        %s232 = smul.addr %s231, 8
        %s233 = scalar_lea.vmem [#allocation7], %s232
        // Predicated region
        $region37: #{tpu_custom_call.1} parent=27 // pred_check
          %p234 = pneg %p85
        $region38: #{tpu_custom_call.1} parent=27 // pred_check_branch
          %236 = sbr.rel (%p234) target = $region40
        $region39: #{tpu_custom_call.1} parent=27 // pred_region
          %238 = vsyncadd %s230, 0
          %s239 = smul.addr %s20, 8
          %s240 = scalar_lea.hbm %s2, %s239
          %s242 = sshll.u32 %s233, 4
          %s243 = int_to_ptr.vmem [resolvable:$true] %s242
          %s244 = sshll.u32 %s240, 4
          %s245 = int_to_ptr.hbm [resolvable:$true] %s244
          %247 = dma.vmem_to_hbm [thread:$0]  %s243, 128, %s245, %s230
        $region40: #{tpu_custom_call.1} parent=27 // pred_fallthru
          _
      $region28: #{tpu_custom_call.1} parent=5 // pred_fallthru
        _
      %p248 = scmp.le.s32.totalorder 2, %s15
      // Predicated region
      $region41: #{tpu_custom_call.1} parent=5 // pred_check
        %p249 = pneg %p248
      $region42: #{tpu_custom_call.1} parent=5 // pred_check_branch
        %251 = sbr.rel (%p249) target = $region44
      $region43: #{tpu_custom_call.1} parent=5 // pred_region
        %s252 = ssub.s32 %s15, 2
        // Predicated region
        $region45: #{tpu_custom_call.1} parent=43 // pred_check
          %p253 = pneg %p91
        $region46: #{tpu_custom_call.1} parent=43 // pred_check_branch
          %255 = sbr.rel (%p253) target = $region48
        $region47: #{tpu_custom_call.1} parent=43 // pred_region
          %s256 = sand.u32 %s76, 1
          %s257 = scalar_lea.sflag [#allocation4], %s256
          %s258 = sand.u32 %s76, 1
          %s259 = smul.addr %s258, 8
          %s260 = scalar_lea.vmem [#allocation7], %s259
          %262 = dma.done %s257, 128
        $region48: #{tpu_custom_call.1} parent=43 // pred_fallthru
          _
      $region44: #{tpu_custom_call.1} parent=5 // pred_fallthru
        _
    $region6: #{tpu_custom_call.1} parent=1 // loop_footer
      %s19 = sadd.s32 1, %s15
    $region7: #{tpu_custom_call.1} parent=1 // loop_footer_branch
      %14 = sbr.rel target = $region3
    $region8: #{tpu_custom_call.1} parent=1 // loop_exit
      _
    %263 = vsyncpa [#allocation3], 1
    %s264 = scalar_lea.sflag [#allocation3], 1
    %265 = vsyncpa %s264, 1
    %266 = vsyncpa [#allocation4], 1
    %s267 = scalar_lea.sflag [#allocation4], 1
    %268 = vsyncpa %s267, 1
    %269 = vsyncpa [#allocation5], 1
    %s270 = scalar_lea.sflag [#allocation5], 1
    %271 = vsyncpa %s270, 1

</llo_original>
